<compile_context>
chip_gen: v7x
topology: tpu7x:2x2x1
jax: 0.10.0
libtpu: 0.0.40
codegen_flags: <defaults>
</compile_context>

<pallas_src>
import functools
import math
import numpy as np

import jax
import jax.numpy as jnp
from jax.experimental import pallas as pl
from jax.experimental.pallas import tpu as pltpu


# ----------------------------- config ---------------------------------------
class Config:
    image_size = (64, 64)       # pretraining image size
    patch_size = 16
    num_detection_tokens = 4
    hidden_size = 32


# ------------------- bicubic weight matrices (host glue) --------------------
def _cubic(t, A=-0.75):
    at = abs(t)
    if at <= 1.0:
        return ((A + 2.0) * at - (A + 3.0)) * at * at + 1.0
    elif at < 2.0:
        return (((at - 5.0) * at + 8.0) * at - 4.0) * A
    return 0.0


def bicubic_matrix(in_size: int, out_size: int) -> np.ndarray:
    """W[out, in] s.t. out = W @ in reproduces PyTorch bicubic, align_corners=False."""
    scale = in_size / out_size
    W = np.zeros((out_size, in_size), dtype=np.float64)
    for i in range(out_size):
        x = (i + 0.5) * scale - 0.5
        x0 = math.floor(x)
        t = x - x0
        ws = [_cubic(t + 1.0), _cubic(t), _cubic(1.0 - t), _cubic(2.0 - t)]
        for k, w in enumerate(ws):
            idx = min(max(x0 - 1 + k, 0), in_size - 1)  # replicate border
            W[i, idx] += w
    return W.astype(np.float32)


@functools.lru_cache(maxsize=None)
def _full_interp_matrix(ph: int, pw: int, new_ph: int, new_pw: int,
                        num_det: int) -> np.ndarray:
    """Block-structured K_full[seq_out, seq_in]: identity on cls/det rows,
    kron(Wh, Ww) on the patch block.  Cached per shape tuple."""
    in_hw, out_hw = ph * pw, new_ph * new_pw
    seq_in = 1 + in_hw + num_det
    seq_out = 1 + out_hw + num_det
    K = np.zeros((seq_out, seq_in), dtype=np.float32)
    K[0, 0] = 1.0                                              # cls passthrough
    Wh = bicubic_matrix(ph, new_ph)                            # [new_ph, ph]
    Ww = bicubic_matrix(pw, new_pw)                            # [new_pw, pw]
    K[1:1 + out_hw, 1:1 + in_hw] = np.kron(Wh, Ww)             # patch block
    if num_det > 0:
        K[1 + out_hw:, 1 + in_hw:] = np.eye(num_det, dtype=np.float32)  # det
    return K


# ------------------------------ Pallas kernel --------------------------------
def _interp_kernel(k_ref, x_ref, o_ref):
    # k_ref: [tile_m, seq_in]   (slice of the block-structured K_full)
    # x_ref: [seq_in, hidden]   (one batch element, native [seq, hidden] layout)
    # o_ref: [tile_m, hidden]   (lane dim = hidden -> lane-dense stores at H>=128)
    o_ref[...] = jnp.dot(
        k_ref[...], x_ref[...], preferred_element_type=jnp.float32
    ).astype(o_ref.dtype)


def _choose_tile_m(seq_out: int, hidden: int, batch: int, itemsize: int) -> int:
    """Pick the output-row tile size.

    Targets ~4 MiB output blocks so (double-buffered out block + K tile +
    resident x) stays well under v5e's 16 MiB default scoped VMEM, and keeps
    at least 2 tiles when batch == 1 so both v7x TensorCores get work.
    """
    target_block_bytes = 4 * 1024 * 1024
    row_bytes = max(1, hidden * itemsize)
    max_rows = max(8, (target_block_bytes // row_bytes) // 8 * 8)
    min_tiles = 2 if batch == 1 else 1
    n_tiles = max(min_tiles, -(-seq_out // max_rows))
    if n_tiles <= 1:
        return seq_out                        # single full-extent block
    tile_m = -(-seq_out // n_tiles)
    tile_m = ((tile_m + 7) // 8) * 8          # sublane-aligned block rows
    return seq_out if tile_m >= seq_out else tile_m


def _apply_pos_embed_matrix(pos_embed: jax.Array, k_full: jax.Array) -> jax.Array:
    """pos_embed: [B, seq_in, H]; k_full: [seq_out, seq_in] -> [B, seq_out, H]."""
    B, seq_in, H = pos_embed.shape
    seq_out = k_full.shape[0]
    tile_m = _choose_tile_m(seq_out, H, B, pos_embed.dtype.itemsize)
    grid_m = pl.cdiv(seq_out, tile_m)

    return pl.pallas_call(
        _interp_kernel,
        out_shape=jax.ShapeDtypeStruct((B, seq_out, H), pos_embed.dtype),
        grid_spec=pltpu.PrefetchScalarGridSpec(
            num_scalar_prefetch=0,
            grid=(B, grid_m),
            in_specs=[
                # K tile: changes with m only (small; ~tile_m*seq_in*4 bytes).
                pl.BlockSpec((tile_m, seq_in), lambda b, m: (m, 0)),
                # x[b]: resident across all m tiles of a batch element.
                pl.BlockSpec((pl.Squeezed(), seq_in, H), lambda b, m: (b, 0, 0)),
            ],
            # Kernel writes the FINAL buffer (cls + patch + det) directly.
            out_specs=pl.BlockSpec((pl.Squeezed(), tile_m, H),
                                   lambda b, m: (b, m, 0)),
        ),
        compiler_params=pltpu.CompilerParams(
            dimension_semantics=("parallel", "parallel")),
    )(k_full, pos_embed)


# ------------------------------ module wrapper --------------------------------
def interpolate_initial_position_embeddings(pos_embed: jax.Array,
                                            config: Config,
                                            img_size=(800, 1344)) -> jax.Array:
    num_det = config.num_detection_tokens
    ph = config.image_size[0] // config.patch_size
    pw = config.image_size[1] // config.patch_size
    new_ph = img_size[0] // config.patch_size
    new_pw = img_size[1] // config.patch_size

    # Precomputed (and cached) block-structured weights: no wrapper-side
    # slicing or concatenate; the kernel emits the final sequence directly.
    K_full = jnp.asarray(_full_interp_matrix(ph, pw, new_ph, new_pw, num_det))
    return _apply_pos_embed_matrix(pos_embed, K_full)


# ----------------------------------- main ------------------------------------
if __name__ == "__main__":
    cfg = Config()
    ph = cfg.image_size[0] // cfg.patch_size                   # 4
    pw = cfg.image_size[1] // cfg.patch_size                   # 4
    B = 2
    num_det = cfg.num_detection_tokens                         # 4
    seq_len = 1 + ph * pw + num_det                            # 21
    hidden = cfg.hidden_size                                   # 32

    key = jax.random.PRNGKey(0)
    pos_embed = jax.random.normal(key, (B, seq_len, hidden), dtype=jnp.float32)

    img_size = (96, 128)                                       # new grid 6 x 8
    new_ph, new_pw = img_size[0] // cfg.patch_size, img_size[1] // cfg.patch_size

    out = interpolate_initial_position_embeddings(pos_embed, cfg, img_size=img_size)
    out = jax.block_until_ready(out)
    assert out.shape == (B, 1 + new_ph * new_pw + num_det, hidden)

    # Structural sanity on K_full: bicubic rows form a partition of unity and
    # cls/det rows are exact one-hot passthrough rows.
    K_np = _full_interp_matrix(ph, pw, new_ph, new_pw, num_det)
    assert np.allclose(K_np.sum(axis=1), 1.0, atol=1e-5)
    assert K_np[0, 0] == 1.0 and np.count_nonzero(K_np[0]) == 1
    assert np.array_equal(K_np[-num_det:, -num_det:], np.eye(num_det, dtype=np.float32))

    # Reference check (pure JAX, same bicubic matrices, NCHW path like PyTorch,
    # with explicit slice + concatenate like the original module).
    Wh = jnp.asarray(bicubic_matrix(ph, new_ph))
    Ww = jnp.asarray(bicubic_matrix(pw, new_pw))
    patch = jnp.transpose(pos_embed[:, 1:1 + ph * pw, :], (0, 2, 1))
    patch = patch.reshape(B, hidden, ph, pw)
    ref_patch = jnp.einsum("Pp,bhpw,Ww->bhPW", Wh, patch, Ww)
    ref_patch = ref_patch.reshape(B, hidden, new_ph * new_pw).transpose(0, 2, 1)
    ref = jnp.concatenate(
        [pos_embed[:, 0:1, :], ref_patch, pos_embed[:, -num_det:, :]], axis=1)

    np.testing.assert_allclose(np.asarray(out), np.asarray(ref), rtol=1e-5, atol=1e-5)
    # cls / det passthrough (identity rows of K_full).
    np.testing.assert_allclose(np.asarray(out[:, 0, :]),
                               np.asarray(pos_embed[:, 0, :]), rtol=1e-5, atol=1e-6)
    np.testing.assert_allclose(np.asarray(out[:, -num_det:, :]),
                               np.asarray(pos_embed[:, -num_det:, :]),
                               rtol=1e-5, atol=1e-6)

    print("KERNEL_OK")
</pallas_src>

<mosaic_0001>
module attributes {stable_mosaic.version = 11 : i64} {
  func.func @_interp_kernel(%arg0: i32, %arg1: i32, %arg2: memref<53x21xf32, #tpu.memory_space<vmem>>, %arg3: memref<1x21x32xf32, #tpu.memory_space<vmem>>, %arg4: memref<1x53x32xf32, #tpu.memory_space<vmem>>) attributes {dimension_semantics = [#tpu.dimension_semantics<parallel>, #tpu.dimension_semantics<parallel>], iteration_bounds = array<i64: 2, 1>, scalar_prefetch = 0 : i64, scratch_operands = 0 : i64, tpu.core_type = #tpu.core_type<tc>, window_params = [{transform_indices = @transform_0, window_bounds = array<i64: 53, 21>}, {transform_indices = @transform_1, window_bounds = array<i64: 1, 21, 32>}, {transform_indices = @transform_2, window_bounds = array<i64: 1, 53, 32>}]} {
    %c0 = arith.constant 0 : index
    %c0_0 = arith.constant 0 : index
    %0 = vector.load %arg2[%c0, %c0_0] : memref<53x21xf32, #tpu.memory_space<vmem>>, vector<53x21xf32>
    %c0_1 = arith.constant 0 : index
    %c0_2 = arith.constant 0 : index
    %c0_3 = arith.constant 0 : index
    %1 = vector.load %arg3[%c0_1, %c0_2, %c0_3] : memref<1x21x32xf32, #tpu.memory_space<vmem>>, vector<1x21x32xf32>
    %2 = vector.shape_cast %1 : vector<1x21x32xf32> to vector<21x32xf32>
    %cst = arith.constant dense<0.000000e+00> : vector<53x32xf32>
    %3 = tpu.matmul %0, %2, %cst {dimension_numbers = #tpu.dot_dimension_numbers<[1], [0], [0], [1], [0, 0, 1, 1], [], []>} : vector<53x21xf32>, vector<21x32xf32>, vector<53x32xf32> -> vector<53x32xf32>
    %c0_4 = arith.constant 0 : index
    %c0_5 = arith.constant 0 : index
    %c0_6 = arith.constant 0 : index
    %4 = vector.load %arg4[%c0_4, %c0_5, %c0_6] : memref<1x53x32xf32, #tpu.memory_space<vmem>>, vector<1x53x32xf32>
    %5 = vector.shape_cast %4 : vector<1x53x32xf32> to vector<53x32xf32>
    %6 = vector.shape_cast %3 : vector<53x32xf32> to vector<1x53x32xf32>
    tpu.vector_store %arg4[%c0_4, %c0_5, %c0_6], %6 {strides = array<i32>} : memref<1x53x32xf32, #tpu.memory_space<vmem>>, vector<1x53x32xf32>,
    return
  }
  func.func @transform_0(%arg0: i32, %arg1: i32) -> (i32, i32) {
    %c0_i32 = arith.constant 0 : i32
    %c0_i32_0 = arith.constant 0 : i32
    return %arg1, %c0_i32 : i32, i32
  }
  func.func @transform_1(%arg0: i32, %arg1: i32) -> (i32, i32, i32) {
    %c0_i32 = arith.constant 0 : i32
    %c0_i32_0 = arith.constant 0 : i32
    %c0_i32_1 = arith.constant 0 : i32
    return %arg0, %c0_i32, %c0_i32_0 : i32, i32, i32
  }
  func.func @transform_2(%arg0: i32, %arg1: i32) -> (i32, i32, i32) {
    %c0_i32 = arith.constant 0 : i32
    %c0_i32_0 = arith.constant 0 : i32
    return %arg0, %arg1, %c0_i32 : i32, i32, i32
  }
}

</mosaic_0001>

<llo_original>
// kernel: tpu_custom_call.1
$region0: #{tpu_custom_call.1}
  #allocation0 [shape = 'u32[]', space=smem, size = 0x4, offset = 0x4, fixed_abs, tag = 'smem constant byte address 0x4 - core index']
  #allocation1 [shape = 'u32[144,128]{1,0:T(1,128)}', space=vmem, size = 0x12000, scoped, tag = 'internal scratch']
  %s0 = inlined_call_operand.vmem [shape: f32[53,21], index: 0, kind: input, shape index: {}]
  %s1 = inlined_call_operand.vmem [shape: f32[2,21,32], index: 1, kind: input, shape index: {}]
  %s2 = inlined_call_operand.vmem [shape: f32[2,53,32], index: 2, kind: output, shape index: {}]
  %s3 = sld [smem:[#allocation0]]
  $region41: #{tpu_custom_call.1} parent=0
    _
  %s5 = ssub.s32 1, %s3
  %s6 = scalar_select 0, %s5, %s3
  loop: start=0, step=1, limit=4
  $region2: #{tpu_custom_call.1} parent=0 // loop_pre_header
    _
  $region3: #{tpu_custom_call.1} parent=0 // loop_header
    %s8 = sphi 0, %s12
    %p9 = scmp.ge.s32.totalorder %s8, 4
    %s15 = sphi 0, %s27
    %s16 = sphi 0, %s23
    %s17 = sphi 0, %s15
    %s18 = sphi 0, %s16
    %s19 = sphi 0, %s17
    %s20 = sphi 0, %s18
    %s30 = sphi 0, %s32
    %s33 = sphi 0, %s30
    %s34 = sphi 0, %s33
    %s50 = sphi 0, %s34
    %s56 = sphi 0, %s58
    %s59 = sphi 0, %s56
    %s60 = sphi 0, %s59
    %s76 = sphi 0, %s60
    %s84 = sphi 0, %s86
    %s87 = sphi 0, %s84
    %s88 = sphi 0, %s87
    %s104 = sphi 0, %s88
  $region4: #{tpu_custom_call.1} parent=0 // loop_header_branch
    %11 = sbr.rel (%p9) target = $region8
  $region5: #{tpu_custom_call.1} parent=0 // loop_body
    %s13 = ssub.s32 %s8, 1
    %s14 = ssub.s32 %s8, 2
    %s21 = sadd.s32 1, %s16
    %p22 = scmp.ge.s32.totalorder %s21, 1
    %s23 = scalar_select %p22, 0, %s21
    %s24 = sadd.s32 1, %s15
    %s25 = scalar_select %p22, %s24, %s15
    %p26 = scmp.ge.s32.totalorder %s25, 2
    %s27 = scalar_select %p26, 0, %s25
    %s28 = ssub.s32 %s16, %s23
    %p29 = scmp.eq.s32.totalorder %s28, 0
    %s31 = sadd.s32 %s30, 1
    %s32 = scalar_select %p29, %s30, %s31
    %p35 = pneg %p29
    %p36 = scmp.eq.s32.totalorder %s8, 1
    %p37 = por %p35, %p36
    %p38 = scmp.ne.s32.totalorder %s30, %s33
    %p39 = scmp.eq.s32.totalorder %s8, 0
    %p40 = por %p38, %p39
    %p41 = scmp.ne.s32.totalorder %s30, %s33
    %p42 = scmp.eq.s32.totalorder %s13, 1
    %p43 = por %p41, %p42
    %p44 = scmp.ne.s32.totalorder %s33, %s34
    %p45 = scmp.eq.s32.totalorder %s13, 0
    %p46 = por %p44, %p45
    %p47 = scmp.ne.s32.totalorder %s33, %s34
    %p48 = scmp.eq.s32.totalorder %s14, 1
    %p49 = por %p47, %p48
    %p51 = scmp.ne.s32.totalorder %s34, %s50
    %p52 = scmp.eq.s32.totalorder %s14, 0
    %p53 = por %p51, %p52
    %s54 = ssub.s32 %s15, %s27
    %p55 = scmp.eq.s32.totalorder %s54, 0
    %s57 = sadd.s32 %s56, 1
    %s58 = scalar_select %p55, %s56, %s57
    %p61 = pneg %p55
    %p62 = scmp.eq.s32.totalorder %s8, 1
    %p63 = por %p61, %p62
    %p64 = scmp.ne.s32.totalorder %s56, %s59
    %p65 = scmp.eq.s32.totalorder %s8, 0
    %p66 = por %p64, %p65
    %p67 = scmp.ne.s32.totalorder %s56, %s59
    %p68 = scmp.eq.s32.totalorder %s13, 1
    %p69 = por %p67, %p68
    %p70 = scmp.ne.s32.totalorder %s59, %s60
    %p71 = scmp.eq.s32.totalorder %s13, 0
    %p72 = por %p70, %p71
    %p73 = scmp.ne.s32.totalorder %s59, %s60
    %p74 = scmp.eq.s32.totalorder %s14, 1
    %p75 = por %p73, %p74
    %p77 = scmp.ne.s32.totalorder %s60, %s76
    %p78 = scmp.eq.s32.totalorder %s14, 0
    %p79 = por %p77, %p78
    %s80 = ssub.s32 %s15, %s27
    %s81 = ssub.s32 %s16, %s23
    %s82 = sor.u32 %s80, %s81
    %p83 = scmp.eq.s32.totalorder %s82, 0
    %s85 = sadd.s32 %s84, 1
    %s86 = scalar_select %p83, %s84, %s85
    %p89 = pneg %p83
    %p90 = scmp.eq.s32.totalorder %s8, 1
    %p91 = por %p89, %p90
    %p92 = scmp.ne.s32.totalorder %s84, %s87
    %p93 = scmp.eq.s32.totalorder %s8, 0
    %p94 = por %p92, %p93
    %p95 = scmp.ne.s32.totalorder %s84, %s87
    %p96 = scmp.eq.s32.totalorder %s13, 1
    %p97 = por %p95, %p96
    %p98 = scmp.ne.s32.totalorder %s87, %s88
    %p99 = scmp.eq.s32.totalorder %s13, 0
    %p100 = por %p98, %p99
    %p101 = scmp.ne.s32.totalorder %s87, %s88
    %p102 = scmp.eq.s32.totalorder %s14, 1
    %p103 = por %p101, %p102
    %p105 = scmp.ne.s32.totalorder %s88, %s104
    %p106 = scmp.eq.s32.totalorder %s14, 0
    %p107 = por %p105, %p106
    %p108 = scmp.le.s32.totalorder 1, %s8
    %p109 = scmp.lt.s32.totalorder %s8, 3
    %p110 = pnand %p108, %p109
    %p111 = pneg %p110
    // Predicated region
    $region9: #{tpu_custom_call.1} parent=5 // pred_check
      _
    $region10: #{tpu_custom_call.1} parent=5 // pred_check_branch
      %113 = sbr.rel (%p110) target = $region12
    $region11: #{tpu_custom_call.1} parent=5 // pred_region
      %s114 = ssub.s32 %s8, 1
      // Predicated region
      $region13: #{tpu_custom_call.1} parent=11 // pred_check
        %p115 = pneg %p46
      $region14: #{tpu_custom_call.1} parent=11 // pred_check_branch
        %117 = sbr.rel (%p115) target = $region16
      $region15: #{tpu_custom_call.1} parent=11 // pred_region
        %s118 = smul.u32 7, %s18
        %p119 = scmp.lt.s32.totalorder %s118, 6
        %s120 = scalar_select %p119, %s118, 6
        %s121 = smul.addr %s120, 8
        %s122 = scalar_lea.vmem %s0, %s121
        %s123 = smul.u32 7, %s18
      $region16: #{tpu_custom_call.1} parent=11 // pred_fallthru
        _
    $region12: #{tpu_custom_call.1} parent=5 // pred_fallthru
      _
    %p124 = scmp.lt.s32.totalorder %s8, 2
    // Predicated region
    $region17: #{tpu_custom_call.1} parent=5 // pred_check
      %p125 = pneg %p124
    $region18: #{tpu_custom_call.1} parent=5 // pred_check_branch
      %127 = sbr.rel (%p125) target = $region20
    $region19: #{tpu_custom_call.1} parent=5 // pred_region
      // Predicated region
      $region21: #{tpu_custom_call.1} parent=19 // pred_check
        %p128 = pneg %p66
      $region22: #{tpu_custom_call.1} parent=19 // pred_check_branch
        %130 = sbr.rel (%p128) target = $region24
      $region23: #{tpu_custom_call.1} parent=19 // pred_region
        %p131 = scmp.lt.s32.totalorder %s15, 1
        %s132 = scalar_select %p131, %s15, 1
        %s133 = smul.addr %s132, 3
        %s134 = smul.addr %s133, 8
        %s135 = scalar_lea.vmem %s1, %s134
      $region24: #{tpu_custom_call.1} parent=19 // pred_fallthru
        _
    $region20: #{tpu_custom_call.1} parent=5 // pred_fallthru
      _
    %p136 = scmp.le.s32.totalorder 1, %s8
    %p137 = scmp.lt.s32.totalorder %s8, 3
    %p138 = pnand %p136, %p137
    %p139 = pneg %p138
    // Predicated region
    $region25: #{tpu_custom_call.1} parent=5 // pred_check
      _
    $region26: #{tpu_custom_call.1} parent=5 // pred_check_branch
      %141 = sbr.rel (%p138) target = $region28
    $region27: #{tpu_custom_call.1} parent=5 // pred_region
      %s142 = ssub.s32 %s8, 1
      %s143 = smul.u32 7, %s18
      %p144 = scmp.lt.s32.totalorder %s143, 6
      %s145 = scalar_select %p144, %s143, 6
      %s146 = smul.addr %s145, 8
      %s147 = scalar_lea.vmem %s0, %s146
      %p148 = pneg %p46
      %p149 = pneg %p43
      %p150 = scmp.lt.s32.totalorder %s17, 1
      %s151 = scalar_select %p150, %s17, 1
      %s152 = smul.addr %s151, 3
      %s153 = smul.addr %s152, 8
      %s154 = scalar_lea.vmem %s1, %s153
      %p155 = pneg %p72
      %p156 = pneg %p69
      %p157 = pneg %p100
      %p158 = pneg %p97
      %s159 = smul.u32 7, %s18
      %p160 = scmp.lt.s32.totalorder %s17, 1
      %s161 = scalar_select %p160, %s17, 1
      %p162 = scmp.lt.s32.totalorder %s159, 6
      %s163 = scalar_select %p162, %s159, 6
      %s164 = smul.addr %s161, 7
      %s165 = sadd.s32 %s163, %s164
      %s166 = smul.addr %s165, 8
      %s167 = scalar_lea.vmem %s2, %s166
      %s168 = smul.u32 7, %s18
      %p169 = scmp.lt.s32.totalorder %s168, 6
      %s170 = scalar_select %p169, %s168, 6
      %s171 = smul.addr %s170, 8
      %s172 = scalar_lea.vmem %s0, %s171
      %s173 = smul.u32 7, %s18
      %p174 = scmp.lt.s32.totalorder %s17, 1
      %s175 = scalar_select %p174, %s17, 1
      %s176 = smul.addr %s175, 3
      %s177 = smul.addr %s176, 8
      %s178 = scalar_lea.vmem %s1, %s177
      %s179 = smul.u32 7, %s18
      %p180 = scmp.lt.s32.totalorder %s17, 1
      %s181 = scalar_select %p180, %s17, 1
      %p182 = scmp.lt.s32.totalorder %s179, 6
      %s183 = scalar_select %p182, %s179, 6
      %s184 = smul.addr %s181, 7
      %s185 = sadd.s32 %s183, %s184
      %s186 = smul.addr %s185, 8
      %s187 = scalar_lea.vmem %s2, %s186
      %s188 = smul.u32 7, %s18
      %v189 = vld [vmem:[%s172] sm:$0xff]
      %v190 = vld [vmem:[%s172 + $0x8] sm:$0xff]
      %v191 = vld [vmem:[%s172 + $0x10] sm:$0xff]
      %v192 = vld [vmem:[%s172 + $0x18] sm:$0xff]
      %v193 = vld [vmem:[%s172 + $0x20] sm:$0xff]
      %v194 = vld [vmem:[%s172 + $0x28] sm:$0xff]
      %v195 = vld [vmem:[%s172 + $0x30] sm:$0x1f]
      %v196 = vld [vmem:[%s178] sm:$0xff]
      %v197 = vld [vmem:[%s178 + $0x8] sm:$0xff]
      %v198 = vld [vmem:[%s178 + $0x10] sm:$0x1f]
      %vm199 = vcmask 171008
      %v201 = vsel %vm199, %v189, 0
      %v204 = vsel %vm199, %v190, 0
      %v207 = vsel %vm199, %v191, 0
      %v210 = vsel %vm199, %v192, 0
      %v213 = vsel %vm199, %v193, 0
      %v216 = vsel %vm199, %v194, 0
      %v219 = vsel %vm199, %v195, 0
      %vm221 = vcmask 1044480
      %v223 = vsel %vm221, %v198, 0
      %225 = vmatprep.subr.mxu0 0.0
      %226 = vmatpush1.msra.mxu0 %v196
      %227 = vmatprep.subr.mxu0 0.0
      %228 = vmatpush1.msra.mxu0 %v197
      %229 = vmatprep.subr.mxu0 0.0
      %230 = vmatpush1.msra.mxu0 %v223
      %231 = vmatprep.subr.mxu0 0.0
      %232 = vmatpush1.msra.mxu0 0.0
      %233 = vmatprep.subr.mxu0 0.0
      %234 = vmatpush1.msra.mxu0 0.0
      %235 = vmatprep.subr.mxu0 0.0
      %236 = vmatpush1.msra.mxu0 0.0
      %237 = vmatprep.subr.mxu0 0.0
      %238 = vmatpush1.msra.mxu0 0.0
      %239 = vmatprep.subr.mxu0 0.0
      %240 = vmatpush1.msra.mxu0 0.0
      %241 = vmatprep.subr.mxu0 0.0
      %242 = vmatpush1.msra.mxu0 0.0
      %243 = vmatprep.subr.mxu0 0.0
      %244 = vmatpush1.msra.mxu0 0.0
      %245 = vmatprep.subr.mxu0 0.0
      %246 = vmatpush1.msra.mxu0 0.0
      %247 = vmatprep.subr.mxu0 0.0
      %248 = vmatpush1.msra.mxu0 0.0
      %249 = vmatprep.subr.mxu0 0.0
      %250 = vmatpush1.msra.mxu0 0.0
      %251 = vmatprep.subr.mxu0 0.0
      %252 = vmatpush1.msra.mxu0 0.0
      %253 = vmatprep.subr.mxu0 0.0
      %254 = vmatpush1.msra.mxu0 0.0
      %255 = vmatprep.subr.mxu0 0.0
      %256 = vmatpush1.msra.mxu0 0.0
      %257 = vmatprep.subr.mxu0 0.0
      %258 = vmatpush1.msra.mxu0 0.0
      %259 = vmatprep.subr.mxu0 0.0
      %260 = vmatpush1.msra.mxu0 0.0
      %261 = vmatprep.subr.mxu0 0.0
      %262 = vmatpush1.msra.mxu0 0.0
      %263 = vmatprep.subr.mxu0 0.0
      %264 = vmatpush1.msra.mxu0 0.0
      %265 = vmatprep.subr.mxu0 0.0
      %266 = vmatpush1.msra.mxu0 0.0
      %267 = vmatprep.subr.mxu0 0.0
      %268 = vmatpush1.msra.mxu0 0.0
      %269 = vmatprep.subr.mxu0 0.0
      %270 = vmatpush1.msra.mxu0 0.0
      %271 = vmatprep.subr.mxu0 0.0
      %272 = vmatpush1.msra.mxu0 0.0
      %273 = vmatprep.subr.mxu0 0.0
      %274 = vmatpush1.msra.mxu0 0.0
      %275 = vmatprep.subr.mxu0 0.0
      %276 = vmatpush1.msra.mxu0 0.0
      %277 = vmatprep.subr.mxu0 0.0
      %278 = vmatpush1.msra.mxu0 0.0
      %279 = vmatprep.subr.mxu0 0.0
      %280 = vmatpush1.msra.mxu0 0.0
      %281 = vmatprep.subr.mxu0 0.0
      %282 = vmatpush1.msra.mxu0 0.0
      %283 = vmatprep.subr.mxu0 0.0
      %284 = vmatpush1.msra.mxu0 0.0
      %285 = vmatprep.subr.mxu0 0.0
      %286 = vmatpush1.msra.mxu0 0.0
      %287 = vmatprep.subr.mxu0 0.0
      %288 = vmatpush1.msra.mxu0 0.0
      %289 = vmatprep.mubr.f32.mxu0 0.0
      %290 = vmatmul.mubr.f32.gmra.mrb[0].mxu0 %v201
      %v291 = vpop.f32.mrb[0].mxu0
      %v292 = vadd.f32 0.0, %v291
      %v293 = vpop.f32.mrb[0].mxu0
      %294 = vmatprep.mubr.f32.mxu0 0.0
      %295 = vmatmul.mubr.f32.gmra.mrb[0].mxu0 %v204
      %v296 = vpop.f32.mrb[0].mxu0
      %v297 = vadd.f32 0.0, %v296
      %v298 = vpop.f32.mrb[0].mxu0
      %299 = vmatprep.mubr.f32.mxu0 0.0
      %300 = vmatmul.mubr.f32.gmra.mrb[0].mxu0 %v207
      %v301 = vpop.f32.mrb[0].mxu0
      %v302 = vadd.f32 0.0, %v301
      %v303 = vpop.f32.mrb[0].mxu0
      %304 = vmatprep.mubr.f32.mxu0 0.0
      %305 = vmatmul.mubr.f32.gmra.mrb[0].mxu0 %v210
      %v306 = vpop.f32.mrb[0].mxu0
      %v307 = vadd.f32 0.0, %v306
      %v308 = vpop.f32.mrb[0].mxu0
      %309 = vmatprep.mubr.f32.mxu0 0.0
      %310 = vmatmul.mubr.f32.gmra.mrb[0].mxu0 %v213
      %v311 = vpop.f32.mrb[0].mxu0
      %v312 = vadd.f32 0.0, %v311
      %v313 = vpop.f32.mrb[0].mxu0
      %314 = vmatprep.mubr.f32.mxu0 0.0
      %315 = vmatmul.mubr.f32.gmra.mrb[0].mxu0 %v216
      %v316 = vpop.f32.mrb[0].mxu0
      %v317 = vadd.f32 0.0, %v316
      %v318 = vpop.f32.mrb[0].mxu0
      %319 = vmatprep.mubr.f32.mxu0 0.0
      %320 = vmatmul.mubr.f32.gmra.mrb[0].mxu0 %v219
      %v321 = vpop.f32.mrb[0].mxu0
      %v322 = vadd.f32 0.0, %v321
      %v323 = vpop.f32.mrb[0].mxu0
      %324 = vdwg.mxu0
      %vm325 = vcmask 261120
      %326 = vst.msk [vmem:[%s187] sm:$0xff] %vm325, %v292
      %327 = vst.msk [vmem:[%s187 + $0x8] sm:$0xff] %vm325, %v297
      %328 = vst.msk [vmem:[%s187 + $0x10] sm:$0xff] %vm325, %v302
      %329 = vst.msk [vmem:[%s187 + $0x18] sm:$0xff] %vm325, %v307
      %330 = vst.msk [vmem:[%s187 + $0x20] sm:$0xff] %vm325, %v312
      %331 = vst.msk [vmem:[%s187 + $0x28] sm:$0xff] %vm325, %v317
      %vm332 = vcmask 258048
      %333 = vst.msk [vmem:[%s187 + $0x30] sm:$0x1f] %vm332, %v322
      %s334 = smul.u32 7, %s18
      %p335 = scmp.lt.s32.totalorder %s17, 1
      %s336 = scalar_select %p335, %s17, 1
      %p337 = scmp.lt.s32.totalorder %s334, 6
      %s338 = scalar_select %p337, %s334, 6
      %s339 = smul.addr %s336, 7
      %s340 = sadd.s32 %s338, %s339
      %s341 = smul.addr %s340, 8
      %s342 = scalar_lea.vmem %s2, %s341
      // Predicated region
      $region29: #{tpu_custom_call.1} parent=27 // pred_check
        %p343 = pneg %p97
      $region30: #{tpu_custom_call.1} parent=27 // pred_check_branch
        %345 = sbr.rel (%p343) target = $region32
      $region31: #{tpu_custom_call.1} parent=27 // pred_region
        %s346 = smul.u32 7, %s18
      $region32: #{tpu_custom_call.1} parent=27 // pred_fallthru
        _
    $region28: #{tpu_custom_call.1} parent=5 // pred_fallthru
      _
    %p347 = scmp.le.s32.totalorder 2, %s8
    // Predicated region
    $region33: #{tpu_custom_call.1} parent=5 // pred_check
      %p348 = pneg %p347
    $region34: #{tpu_custom_call.1} parent=5 // pred_check_branch
      %350 = sbr.rel (%p348) target = $region36
    $region35: #{tpu_custom_call.1} parent=5 // pred_region
      %s351 = ssub.s32 %s8, 2
      // Predicated region
      $region37: #{tpu_custom_call.1} parent=35 // pred_check
        %p352 = pneg %p103
      $region38: #{tpu_custom_call.1} parent=35 // pred_check_branch
        %354 = sbr.rel (%p352) target = $region40
      $region39: #{tpu_custom_call.1} parent=35 // pred_region
        %s355 = smul.u32 7, %s20
        %p356 = scmp.lt.s32.totalorder %s19, 1
        %s357 = scalar_select %p356, %s19, 1
        %p358 = scmp.lt.s32.totalorder %s355, 6
        %s359 = scalar_select %p358, %s355, 6
        %s360 = smul.addr %s357, 7
        %s361 = sadd.s32 %s359, %s360
        %s362 = smul.addr %s361, 8
        %s363 = scalar_lea.vmem %s2, %s362
      $region40: #{tpu_custom_call.1} parent=35 // pred_fallthru
        _
    $region36: #{tpu_custom_call.1} parent=5 // pred_fallthru
      _
  $region6: #{tpu_custom_call.1} parent=0 // loop_footer
    %s12 = sadd.s32 1, %s8
  $region7: #{tpu_custom_call.1} parent=0 // loop_footer_branch
    %7 = sbr.rel target = $region3
  $region8: #{tpu_custom_call.1} parent=0 // loop_exit
    _

</llo_original>
